<compile_context>
chip_gen: v6e
topology: v6e:2x2x1
jax: 0.10.0
libtpu: 0.0.40
codegen_flags: <defaults>
</compile_context>

<pallas_src>
import functools

import jax
import jax.numpy as jnp
from jax import lax
from jax.experimental import pallas as pl
from jax.experimental.pallas import tpu as pltpu


def _basic_conv_kernel(x_ref, w_ref, b_ref, sc_ref, sh_ref, a_ref, o_ref, ybuf,
                       *, pad, d, K, L, L1):
    # x_ref : (N, C_in, L)        input, NCL, L lane-dense
    # w_ref : (K, C_out, C_in)    conv weight, one (C_out, C_in) matrix per tap
    # b_ref : (C_out, 1)          conv bias
    # sc_ref: (C_in, 1)           folded BatchNorm scale  (gamma / sqrt(var+eps))
    # sh_ref: (C_in, 1)           folded BatchNorm shift  (beta - mean*scale)
    # a_ref : (1,)  SMEM          PReLU slope (shared parameter)
    # o_ref : (N, C_out, L1)      stride-1 conv output, L lane-dense
    # ybuf  : (N, C_in, L+2*pad)  VMEM scratch holding zero-padded BN+PReLU activations
    N = x_ref.shape[0]

    # ---- BatchNorm (eval, folded) + PReLU, fused elementwise on the VPU ----
    x = x_ref[...]
    y = x * sc_ref[...][None, :, :] + sh_ref[...][None, :, :]
    a = a_ref[0]
    y = jnp.where(y > 0, y, a * y)

    # ---- 'same' padding fused in-kernel: zero edges of the scratch, write center ----
    if pad > 0:
        ybuf[...] = jnp.zeros_like(ybuf)
    ybuf[:, :, pad:pad + L] = y

    # ---- Dilated conv: per-tap (C_out, C_in) @ (C_in, L1) matmul, L lane-dense ----
    bias = b_ref[...]                                   # (C_out, 1) broadcasts over L
    for n in range(N):                                  # N is tiny and static
        # First tap initializes the accumulator directly (no zeros init).
        acc = jnp.dot(w_ref[0], ybuf[n, :, 0:L1],
                      preferred_element_type=jnp.float32)
        for k in range(1, K):                           # K is tiny and static
            acc = acc + jnp.dot(w_ref[k], ybuf[n, :, k * d:k * d + L1],
                                preferred_element_type=jnp.float32)
        o_ref[n] = (acc + bias).astype(o_ref.dtype)


def basic_conv_forward(x, conv_w, conv_b, bn_gamma, bn_beta, bn_mean, bn_var,
                       prelu_a, *, stride=1, dilation=1, eps=1e-5):
    """BasicConv forward: Conv1d(PReLU(BatchNorm1d(x))), inference-mode BN.

    x:      (N, C_in, L)        PyTorch NCL layout
    conv_w: (C_out, C_in, K)    Conv1d weight
    conv_b: (C_out,)            Conv1d bias
    bn_*:   (C_in,)             BatchNorm1d gamma / beta / running_mean / running_var
    prelu_a: scalar             PReLU shared slope
    returns (N, C_out, L_out)
    """
    N, C_in, L = x.shape
    C_out, _, K = conv_w.shape
    d = int(dilation)
    pad = ((K - 1) // 2) * d
    L1 = L + 2 * pad - d * (K - 1)          # stride-1 output length

    # Fold eval-mode BatchNorm into a per-channel affine transform (tiny vectors).
    inv_std = bn_gamma / jnp.sqrt(bn_var + eps)
    bn_scale = inv_std.reshape(C_in, 1).astype(x.dtype)
    bn_shift = (bn_beta - bn_mean * inv_std).reshape(C_in, 1).astype(x.dtype)

    # Only the tiny weight tensor is rearranged; activations keep NCL (no transposes).
    w_koi = jnp.transpose(conv_w, (2, 0, 1))            # (K, C_out, C_in)
    b_col = conv_b.reshape(C_out, 1).astype(jnp.float32)
    a_arr = jnp.asarray(prelu_a, dtype=x.dtype).reshape(1)

    kernel = functools.partial(_basic_conv_kernel, pad=pad, d=d, K=K, L=L, L1=L1)

    out = pl.pallas_call(
        kernel,
        out_shape=jax.ShapeDtypeStruct((N, C_out, L1), x.dtype),
        in_specs=[
            pl.BlockSpec(memory_space=pltpu.MemorySpace.VMEM),   # x
            pl.BlockSpec(memory_space=pltpu.MemorySpace.VMEM),   # conv weight
            pl.BlockSpec(memory_space=pltpu.MemorySpace.VMEM),   # conv bias
            pl.BlockSpec(memory_space=pltpu.MemorySpace.VMEM),   # bn scale
            pl.BlockSpec(memory_space=pltpu.MemorySpace.VMEM),   # bn shift
            pl.BlockSpec(memory_space=pltpu.MemorySpace.SMEM),   # prelu slope (scalar)
        ],
        out_specs=pl.BlockSpec(memory_space=pltpu.MemorySpace.VMEM),
        scratch_shapes=[pltpu.VMEM((N, C_in, L + 2 * pad), x.dtype)],
    )(x, w_koi, b_col, bn_scale, bn_shift, a_arr)

    if stride > 1:
        # TODO(synk): fold stride decimation into the kernel tap windows; the shipped
        # module config uses stride=1, so this wrapper slice is never taken there.
        out = out[:, :, ::stride]
    return out


def reference_forward(x, conv_w, conv_b, bn_gamma, bn_beta, bn_mean, bn_var,
                      prelu_a, *, stride=1, dilation=1, eps=1e-5):
    """Pure-JAX reference: eval-mode BN -> PReLU -> dilated Conv1d (+bias)."""
    inv_std = bn_gamma / jnp.sqrt(bn_var + eps)
    y = (x - bn_mean[None, :, None]) * inv_std[None, :, None] + bn_beta[None, :, None]
    y = jnp.where(y > 0, y, prelu_a * y)
    K = conv_w.shape[-1]
    pad = ((K - 1) // 2) * dilation
    out = lax.conv_general_dilated(
        y, conv_w, window_strides=(stride,), padding=[(pad, pad)],
        rhs_dilation=(dilation,), dimension_numbers=("NCH", "OIH", "NCH"))
    return out + conv_b[None, :, None]


if __name__ == "__main__":
    # Module config: BasicConv(nIn=4, nOut=8, kSize=3, stride=1, dilation=1)
    nIn, nOut, kSize = 4, 8, 3
    N, L = 2, 16

    key = jax.random.PRNGKey(0)
    ks = jax.random.split(key, 7)
    x = jax.random.normal(ks[0], (N, nIn, L), dtype=jnp.float32)
    conv_w = jax.random.normal(ks[1], (nOut, nIn, kSize), dtype=jnp.float32) * 0.2
    conv_b = jax.random.normal(ks[2], (nOut,), dtype=jnp.float32) * 0.1
    bn_gamma = 1.0 + 0.1 * jax.random.normal(ks[3], (nIn,), dtype=jnp.float32)
    bn_beta = 0.1 * jax.random.normal(ks[4], (nIn,), dtype=jnp.float32)
    bn_mean = 0.1 * jax.random.normal(ks[5], (nIn,), dtype=jnp.float32)
    bn_var = jnp.abs(1.0 + 0.1 * jax.random.normal(ks[6], (nIn,), dtype=jnp.float32))
    prelu_a = jnp.float32(0.25)     # PyTorch PReLU default init

    # Exercise the default config plus dilation / stride variants.
    for (stride, dilation) in [(1, 1), (1, 2), (2, 1)]:
        fwd = jax.jit(functools.partial(basic_conv_forward,
                                        stride=stride, dilation=dilation))
        out = jax.block_until_ready(
            fwd(x, conv_w, conv_b, bn_gamma, bn_beta, bn_mean, bn_var, prelu_a))
        ref = reference_forward(x, conv_w, conv_b, bn_gamma, bn_beta, bn_mean,
                                bn_var, prelu_a, stride=stride, dilation=dilation)
        assert out.shape == ref.shape, (stride, dilation, out.shape, ref.shape)
        assert jnp.allclose(out, ref, atol=1e-5, rtol=1e-5), (stride, dilation)

    print("KERNEL_OK")
</pallas_src>

<mosaic_0001>
module attributes {stable_mosaic.version = 11 : i64} {
  func.func @_basic_conv_kernel(%arg0: memref<2x4x16xf32, #tpu.memory_space<vmem>>, %arg1: memref<3x8x4xf32, #tpu.memory_space<vmem>>, %arg2: memref<8x1xf32, #tpu.memory_space<vmem>>, %arg3: memref<4x1xf32, #tpu.memory_space<vmem>>, %arg4: memref<4x1xf32, #tpu.memory_space<vmem>>, %arg5: memref<1xf32, #tpu.memory_space<smem>>, %arg6: memref<2x8x16xf32, #tpu.memory_space<vmem>>, %arg7: memref<2x4x18xf32, #tpu.memory_space<vmem>>) attributes {dimension_semantics = [], scalar_prefetch = 0 : i64, scratch_operands = 1 : i64, tpu.core_type = #tpu.core_type<tc>} {
    %c0 = arith.constant 0 : index
    %c0_0 = arith.constant 0 : index
    %c0_1 = arith.constant 0 : index
    %0 = vector.load %arg0[%c0, %c0_0, %c0_1] : memref<2x4x16xf32, #tpu.memory_space<vmem>>, vector<2x4x16xf32>
    %c0_2 = arith.constant 0 : index
    %c0_3 = arith.constant 0 : index
    %1 = vector.load %arg3[%c0_2, %c0_3] : memref<4x1xf32, #tpu.memory_space<vmem>>, vector<4x1xf32>
    %2 = vector.shape_cast %1 : vector<4x1xf32> to vector<1x4x1xf32>
    %3 = vector.broadcast %2 : vector<1x4x1xf32> to vector<2x4x16xf32>
    %4 = arith.mulf %0, %3 : vector<2x4x16xf32>
    %c0_4 = arith.constant 0 : index
    %c0_5 = arith.constant 0 : index
    %5 = vector.load %arg4[%c0_4, %c0_5] : memref<4x1xf32, #tpu.memory_space<vmem>>, vector<4x1xf32>
    %6 = vector.shape_cast %5 : vector<4x1xf32> to vector<1x4x1xf32>
    %7 = vector.broadcast %6 : vector<1x4x1xf32> to vector<2x4x16xf32>
    %8 = arith.addf %4, %7 : vector<2x4x16xf32>
    %c0_6 = arith.constant 0 : index
    %9 = memref.load %arg5[%c0_6] : memref<1xf32, #tpu.memory_space<smem>>
    %cst = arith.constant 0.000000e+00 : f32
    %10 = vector.broadcast %cst : f32 to vector<2x4x16xf32>
    %11 = arith.cmpf ogt, %8, %10 : vector<2x4x16xf32>
    %12 = vector.broadcast %9 : f32 to vector<2x4x16xf32>
    %13 = arith.mulf %12, %8 : vector<2x4x16xf32>
    %14 = arith.select %11, %8, %13 : vector<2x4x16xi1>, vector<2x4x16xf32>
    %cst_7 = arith.constant 0.000000e+00 : f32
    %15 = vector.broadcast %cst_7 : f32 to vector<2x4x18xf32>
    %c0_8 = arith.constant 0 : index
    %c0_9 = arith.constant 0 : index
    %c0_10 = arith.constant 0 : index
    %16 = vector.load %arg7[%c0_8, %c0_9, %c0_10] : memref<2x4x18xf32, #tpu.memory_space<vmem>>, vector<2x4x18xf32>
    tpu.vector_store %arg7[%c0_8, %c0_9, %c0_10], %15 {strides = array<i32>} : memref<2x4x18xf32, #tpu.memory_space<vmem>>, vector<2x4x18xf32>,
    %c0_11 = arith.constant 0 : index
    %c0_12 = arith.constant 0 : index
    %c1 = arith.constant 1 : index
    %17 = vector.load %arg7[%c0_11, %c0_12, %c1] : memref<2x4x18xf32, #tpu.memory_space<vmem>>, vector<2x4x16xf32>
    tpu.vector_store %arg7[%c0_11, %c0_12, %c1], %14 {strides = array<i32>} : memref<2x4x18xf32, #tpu.memory_space<vmem>>, vector<2x4x16xf32>,
    %c0_13 = arith.constant 0 : index
    %c0_14 = arith.constant 0 : index
    %18 = vector.load %arg2[%c0_13, %c0_14] : memref<8x1xf32, #tpu.memory_space<vmem>>, vector<8x1xf32>
    %c0_15 = arith.constant 0 : index
    %c0_16 = arith.constant 0 : index
    %c0_17 = arith.constant 0 : index
    %19 = vector.load %arg1[%c0_15, %c0_16, %c0_17] : memref<3x8x4xf32, #tpu.memory_space<vmem>>, vector<1x8x4xf32>
    %20 = vector.shape_cast %19 : vector<1x8x4xf32> to vector<8x4xf32>
    %c0_18 = arith.constant 0 : index
    %c0_19 = arith.constant 0 : index
    %c0_20 = arith.constant 0 : index
    %21 = vector.load %arg7[%c0_18, %c0_19, %c0_20] : memref<2x4x18xf32, #tpu.memory_space<vmem>>, vector<1x4x16xf32>
    %22 = vector.shape_cast %21 : vector<1x4x16xf32> to vector<4x16xf32>
    %cst_21 = arith.constant dense<0.000000e+00> : vector<8x16xf32>
    %23 = tpu.matmul %20, %22, %cst_21 {dimension_numbers = #tpu.dot_dimension_numbers<[1], [0], [0], [1], [0, 0, 1, 1], [], []>} : vector<8x4xf32>, vector<4x16xf32>, vector<8x16xf32> -> vector<8x16xf32>
    %c1_22 = arith.constant 1 : index
    %c0_23 = arith.constant 0 : index
    %c0_24 = arith.constant 0 : index
    %24 = vector.load %arg1[%c1_22, %c0_23, %c0_24] : memref<3x8x4xf32, #tpu.memory_space<vmem>>, vector<1x8x4xf32>
    %25 = vector.shape_cast %24 : vector<1x8x4xf32> to vector<8x4xf32>
    %c0_25 = arith.constant 0 : index
    %c0_26 = arith.constant 0 : index
    %c1_27 = arith.constant 1 : index
    %26 = vector.load %arg7[%c0_25, %c0_26, %c1_27] : memref<2x4x18xf32, #tpu.memory_space<vmem>>, vector<1x4x16xf32>
    %27 = vector.shape_cast %26 : vector<1x4x16xf32> to vector<4x16xf32>
    %cst_28 = arith.constant dense<0.000000e+00> : vector<8x16xf32>
    %28 = tpu.matmul %25, %27, %cst_28 {dimension_numbers = #tpu.dot_dimension_numbers<[1], [0], [0], [1], [0, 0, 1, 1], [], []>} : vector<8x4xf32>, vector<4x16xf32>, vector<8x16xf32> -> vector<8x16xf32>
    %29 = arith.addf %23, %28 : vector<8x16xf32>
    %c2 = arith.constant 2 : index
    %c0_29 = arith.constant 0 : index
    %c0_30 = arith.constant 0 : index
    %30 = vector.load %arg1[%c2, %c0_29, %c0_30] : memref<3x8x4xf32, #tpu.memory_space<vmem>>, vector<1x8x4xf32>
    %31 = vector.shape_cast %30 : vector<1x8x4xf32> to vector<8x4xf32>
    %c0_31 = arith.constant 0 : index
    %c0_32 = arith.constant 0 : index
    %c2_33 = arith.constant 2 : index
    %32 = vector.load %arg7[%c0_31, %c0_32, %c2_33] : memref<2x4x18xf32, #tpu.memory_space<vmem>>, vector<1x4x16xf32>
    %33 = vector.shape_cast %32 : vector<1x4x16xf32> to vector<4x16xf32>
    %cst_34 = arith.constant dense<0.000000e+00> : vector<8x16xf32>
    %34 = tpu.matmul %31, %33, %cst_34 {dimension_numbers = #tpu.dot_dimension_numbers<[1], [0], [0], [1], [0, 0, 1, 1], [], []>} : vector<8x4xf32>, vector<4x16xf32>, vector<8x16xf32> -> vector<8x16xf32>
    %35 = arith.addf %29, %34 : vector<8x16xf32>
    %36 = vector.broadcast %18 : vector<8x1xf32> to vector<8x16xf32>
    %37 = arith.addf %35, %36 : vector<8x16xf32>
    %c0_35 = arith.constant 0 : index
    %c0_36 = arith.constant 0 : index
    %c0_37 = arith.constant 0 : index
    %38 = vector.load %arg6[%c0_35, %c0_36, %c0_37] : memref<2x8x16xf32, #tpu.memory_space<vmem>>, vector<1x8x16xf32>
    %39 = vector.shape_cast %38 : vector<1x8x16xf32> to vector<8x16xf32>
    %40 = vector.shape_cast %37 : vector<8x16xf32> to vector<1x8x16xf32>
    tpu.vector_store %arg6[%c0_35, %c0_36, %c0_37], %40 {strides = array<i32>} : memref<2x8x16xf32, #tpu.memory_space<vmem>>, vector<1x8x16xf32>,
    %c0_38 = arith.constant 0 : index
    %c0_39 = arith.constant 0 : index
    %c0_40 = arith.constant 0 : index
    %41 = vector.load %arg1[%c0_38, %c0_39, %c0_40] : memref<3x8x4xf32, #tpu.memory_space<vmem>>, vector<1x8x4xf32>
    %42 = vector.shape_cast %41 : vector<1x8x4xf32> to vector<8x4xf32>
    %c1_41 = arith.constant 1 : index
    %c0_42 = arith.constant 0 : index
    %c0_43 = arith.constant 0 : index
    %43 = vector.load %arg7[%c1_41, %c0_42, %c0_43] : memref<2x4x18xf32, #tpu.memory_space<vmem>>, vector<1x4x16xf32>
    %44 = vector.shape_cast %43 : vector<1x4x16xf32> to vector<4x16xf32>
    %cst_44 = arith.constant dense<0.000000e+00> : vector<8x16xf32>
    %45 = tpu.matmul %42, %44, %cst_44 {dimension_numbers = #tpu.dot_dimension_numbers<[1], [0], [0], [1], [0, 0, 1, 1], [], []>} : vector<8x4xf32>, vector<4x16xf32>, vector<8x16xf32> -> vector<8x16xf32>
    %c1_45 = arith.constant 1 : index
    %c0_46 = arith.constant 0 : index
    %c0_47 = arith.constant 0 : index
    %46 = vector.load %arg1[%c1_45, %c0_46, %c0_47] : memref<3x8x4xf32, #tpu.memory_space<vmem>>, vector<1x8x4xf32>
    %47 = vector.shape_cast %46 : vector<1x8x4xf32> to vector<8x4xf32>
    %c1_48 = arith.constant 1 : index
    %c0_49 = arith.constant 0 : index
    %c1_50 = arith.constant 1 : index
    %48 = vector.load %arg7[%c1_48, %c0_49, %c1_50] : memref<2x4x18xf32, #tpu.memory_space<vmem>>, vector<1x4x16xf32>
    %49 = vector.shape_cast %48 : vector<1x4x16xf32> to vector<4x16xf32>
    %cst_51 = arith.constant dense<0.000000e+00> : vector<8x16xf32>
    %50 = tpu.matmul %47, %49, %cst_51 {dimension_numbers = #tpu.dot_dimension_numbers<[1], [0], [0], [1], [0, 0, 1, 1], [], []>} : vector<8x4xf32>, vector<4x16xf32>, vector<8x16xf32> -> vector<8x16xf32>
    %51 = arith.addf %45, %50 : vector<8x16xf32>
    %c2_52 = arith.constant 2 : index
    %c0_53 = arith.constant 0 : index
    %c0_54 = arith.constant 0 : index
    %52 = vector.load %arg1[%c2_52, %c0_53, %c0_54] : memref<3x8x4xf32, #tpu.memory_space<vmem>>, vector<1x8x4xf32>
    %53 = vector.shape_cast %52 : vector<1x8x4xf32> to vector<8x4xf32>
    %c1_55 = arith.constant 1 : index
    %c0_56 = arith.constant 0 : index
    %c2_57 = arith.constant 2 : index
    %54 = vector.load %arg7[%c1_55, %c0_56, %c2_57] : memref<2x4x18xf32, #tpu.memory_space<vmem>>, vector<1x4x16xf32>
    %55 = vector.shape_cast %54 : vector<1x4x16xf32> to vector<4x16xf32>
    %cst_58 = arith.constant dense<0.000000e+00> : vector<8x16xf32>
    %56 = tpu.matmul %53, %55, %cst_58 {dimension_numbers = #tpu.dot_dimension_numbers<[1], [0], [0], [1], [0, 0, 1, 1], [], []>} : vector<8x4xf32>, vector<4x16xf32>, vector<8x16xf32> -> vector<8x16xf32>
    %57 = arith.addf %51, %56 : vector<8x16xf32>
    %58 = vector.broadcast %18 : vector<8x1xf32> to vector<8x16xf32>
    %59 = arith.addf %57, %58 : vector<8x16xf32>
    %c1_59 = arith.constant 1 : index
    %c0_60 = arith.constant 0 : index
    %c0_61 = arith.constant 0 : index
    %60 = vector.load %arg6[%c1_59, %c0_60, %c0_61] : memref<2x8x16xf32, #tpu.memory_space<vmem>>, vector<1x8x16xf32>
    %61 = vector.shape_cast %60 : vector<1x8x16xf32> to vector<8x16xf32>
    %62 = vector.shape_cast %59 : vector<8x16xf32> to vector<1x8x16xf32>
    tpu.vector_store %arg6[%c1_59, %c0_60, %c0_61], %62 {strides = array<i32>} : memref<2x8x16xf32, #tpu.memory_space<vmem>>, vector<1x8x16xf32>,
    return
  }
}

</mosaic_0001>

<llo_original>
// kernel: basic_conv_forward.1
$region0: #{basic_conv_forward.1}
  #allocation0 [shape = 'u32[]', space=smem, size = 0x4, offset = 0x4, fixed_abs, tag = 'smem constant byte address 0x4 - core index']
  #allocation1 [shape = 'u32[144,128]{1,0:T(1,128)}', space=vmem, size = 0x12000, scoped, tag = 'internal scratch']
  #allocation2 [shape = 'f32[2,4,18]{2,1,0:T(4,128)}', space=vmem, size = 0x1000, scoped, tag = 'scratch operand']
  #allocation3 [shape = 'f32[1]{0:T(128)S(6)}', space=smem, size = 0x200, scoped, tag = 'scoped memory for basic_conv_forward.1']
  %s0 = inlined_call_operand.vmem [shape: f32[2,4,16], index: 0, kind: input, shape index: {}]
  %s1 = inlined_call_operand.vmem [shape: f32[3,8,4], index: 1, kind: input, shape index: {}]
  %s2 = inlined_call_operand.vmem [shape: f32[8,1], index: 2, kind: input, shape index: {}]
  %s3 = inlined_call_operand.vmem [shape: f32[4,1], index: 3, kind: input, shape index: {}]
  %s4 = inlined_call_operand.vmem [shape: f32[4,1], index: 4, kind: input, shape index: {}]
  %s5 = inlined_call_operand.<no memory space> [shape: f32[1], index: 5, kind: input, shape index: {}]
  %s6 = inlined_call_operand.hbm [shape: f32[2,8,16], index: 6, kind: output, shape index: {}]
  %s7 = sld [smem:[#allocation0]]
  $region34: #{basic_conv_forward.1} parent=0
    _
  %s9 = ssub.s32 1, %s7
  %s10 = scalar_select 0, %s9, %s7
  %11 = sst [smem:[#allocation3]] %s5
  $region1: #{basic_conv_forward.1} parent=0
    #allocation4 [shape = 'u8[8192]{0}', space=vmem, size = 0x2000, scoped, tag = 'output window, operand 0, single buffered']
    #allocation5 [shape = 's32[1]{0}', space=sflag, size = 0x4, scoped, tag = 'scoped memory for basic_conv_forward.1']
    %12 = vsyncpa [#allocation5], 0
    // Predicated region
    $region2: #{basic_conv_forward.1} parent=1 // pred_check
      _
    $region3: #{basic_conv_forward.1} parent=1 // pred_check_branch
      %14 = sbr.rel (0) target = $region5
    $region4: #{basic_conv_forward.1} parent=1 // pred_region
      _
    $region5: #{basic_conv_forward.1} parent=1 // pred_fallthru
      _
    // Predicated region
    $region6: #{basic_conv_forward.1} parent=1 // pred_check
      _
    $region7: #{basic_conv_forward.1} parent=1 // pred_check_branch
      %16 = sbr.rel (0) target = $region9
    $region8: #{basic_conv_forward.1} parent=1 // pred_region
      _
    $region9: #{basic_conv_forward.1} parent=1 // pred_fallthru
      _
    // Predicated region
    $region10: #{basic_conv_forward.1} parent=1 // pred_check
      _
    $region11: #{basic_conv_forward.1} parent=1 // pred_check_branch
      %18 = sbr.rel (0) target = $region13
    $region12: #{basic_conv_forward.1} parent=1 // pred_region
      _
    $region13: #{basic_conv_forward.1} parent=1 // pred_fallthru
      _
    // Predicated region
    $region14: #{basic_conv_forward.1} parent=1 // pred_check
      _
    $region15: #{basic_conv_forward.1} parent=1 // pred_check_branch
      %20 = sbr.rel (0) target = $region17
    $region16: #{basic_conv_forward.1} parent=1 // pred_region
      _
    $region17: #{basic_conv_forward.1} parent=1 // pred_fallthru
      _
    // Predicated region
    $region18: #{basic_conv_forward.1} parent=1 // pred_check
      _
    $region19: #{basic_conv_forward.1} parent=1 // pred_check_branch
      %22 = sbr.rel (0) target = $region21
    $region20: #{basic_conv_forward.1} parent=1 // pred_region
      _
    $region21: #{basic_conv_forward.1} parent=1 // pred_fallthru
      _
    // Predicated region
    $region22: #{basic_conv_forward.1} parent=1 // pred_check
      _
    $region23: #{basic_conv_forward.1} parent=1 // pred_check_branch
      %24 = sbr.rel (0) target = $region25
    $region24: #{basic_conv_forward.1} parent=1 // pred_region
      _
    $region25: #{basic_conv_forward.1} parent=1 // pred_fallthru
      _
    %v25 = vld [vmem:[%s0] sm:$0xf]
    %v26 = vld [vmem:[%s0 + $0x4] sm:$0xf]
    %v27 = vld [vmem:[%s3] sm:$0xf]
    %29 = vset.pattern.permute.xlu0 0
    %30 = vperm.xlu0 %29, %v27
    %v31 = vpop.permute.xlu0 %30
    %v33 = vmul.f32 %v25, %v31
    %v34 = vmul.f32 %v26, %v31
    %v35 = vld [vmem:[%s4] sm:$0xf]
    %37 = vset.pattern.permute.xlu0 0
    %38 = vperm.xlu0 %37, %v35
    %v39 = vpop.permute.xlu0 %38
    %v41 = vadd.f32 %v33, %v39
    %v42 = vadd.f32 %v34, %v39
    %s43 = sld [smem:[#allocation3]]
    %vm44 = vcmp.gt.f32.partialorder %v41, 0.0
    %vm45 = vcmp.gt.f32.partialorder %v42, 0.0
    %v46 = vstv %s43
    %v47 = vmul.f32 %v46, %v41
    %v48 = vmul.f32 %v46, %v42
    %v49 = vsel %vm44, %v41, %v47
    %v50 = vsel %vm45, %v42, %v48
    %vm51 = vcmask 142336
    %52 = vst.msk [vmem:[#allocation2] sm:$0xf] %vm51, 0.0
    %53 = vst.msk [vmem:[#allocation2 + $0x4] sm:$0xf] %vm51, 0.0
    %56 = vrot.lane.b32.xlu0 %v49, 1
    %v57 = vpop.permute.xlu0 %56
    %58 = vrot.lane.b32.xlu0 %v50, 1
    %v59 = vpop.permute.xlu0 %58
    %vm62 = vcmask 134152
    %63 = vst.msk [vmem:[#allocation2] sm:$0xf] %vm62, %v57
    %64 = vst.msk [vmem:[#allocation2 + $0x4] sm:$0xf] %vm62, %v59
    %v65 = vld [vmem:[%s2] sm:$0xff]
    %v66 = vld [vmem:[%s1] sm:$0xff]
    %v67 = vld [vmem:[#allocation2] sm:$0xf]
    %s68 = scalar_lea.vmem %s1, 8
    %v69 = vld [vmem:[%s68] sm:$0xff]
    %71 = vrot.lane.b32.xlu0 %v67, 127
    %v72 = vpop.permute.xlu0 %71
    %vm73 = vcmask 31744
    %v75 = vsel %vm73, %v69, 0
    %vm77 = vcmask 1043456
    %v78 = vsel %vm77, %v72, 0
    %80 = vmatprep.subr.mxu0 0.0
    %81 = vmatpush1.msra.mxu0 0.0
    %82 = vmatprep.subr.mxu0 0.0
    %83 = vmatpush1.msra.mxu0 0.0
    %84 = vmatprep.subr.mxu0 0.0
    %85 = vmatpush1.msra.mxu0 0.0
    %86 = vmatprep.subr.mxu0 0.0
    %87 = vmatpush1.msra.mxu0 0.0
    %88 = vmatprep.subr.mxu0 0.0
    %89 = vmatpush1.msra.mxu0 0.0
    %90 = vmatprep.subr.mxu0 0.0
    %91 = vmatpush1.msra.mxu0 0.0
    %92 = vmatprep.subr.mxu0 0.0
    %93 = vmatpush1.msra.mxu0 0.0
    %94 = vmatprep.subr.mxu0 0.0
    %95 = vmatpush1.msra.mxu0 0.0
    %96 = vmatprep.subr.mxu0 0.0
    %97 = vmatpush1.msra.mxu0 0.0
    %98 = vmatprep.subr.mxu0 0.0
    %99 = vmatpush1.msra.mxu0 0.0
    %100 = vmatprep.subr.mxu0 0.0
    %101 = vmatpush1.msra.mxu0 0.0
    %102 = vmatprep.subr.mxu0 0.0
    %103 = vmatpush1.msra.mxu0 0.0
    %104 = vmatprep.subr.mxu0 0.0
    %105 = vmatpush1.msra.mxu0 0.0
    %106 = vmatprep.subr.mxu0 0.0
    %107 = vmatpush1.msra.mxu0 0.0
    %108 = vmatprep.subr.mxu0 0.0
    %109 = vmatpush1.msra.mxu0 0.0
    %110 = vmatprep.subr.mxu0 0.0
    %111 = vmatpush1.msra.mxu0 %v78
    %112 = vmatprep.subr.mxu0 0.0
    %113 = vmatpush2.msra.mxu0 0.0
    %114 = vmatprep.subr.mxu0 0.0
    %115 = vmatpush2.msra.mxu0 0.0
    %116 = vmatprep.subr.mxu0 0.0
    %117 = vmatpush2.msra.mxu0 0.0
    %118 = vmatprep.subr.mxu0 0.0
    %119 = vmatpush2.msra.mxu0 0.0
    %120 = vmatprep.subr.mxu0 0.0
    %121 = vmatpush2.msra.mxu0 0.0
    %122 = vmatprep.subr.mxu0 0.0
    %123 = vmatpush2.msra.mxu0 0.0
    %124 = vmatprep.subr.mxu0 0.0
    %125 = vmatpush2.msra.mxu0 0.0
    %126 = vmatprep.subr.mxu0 0.0
    %127 = vmatpush2.msra.mxu0 0.0
    %128 = vmatprep.subr.mxu0 0.0
    %129 = vmatpush2.msra.mxu0 0.0
    %130 = vmatprep.subr.mxu0 0.0
    %131 = vmatpush2.msra.mxu0 0.0
    %132 = vmatprep.subr.mxu0 0.0
    %133 = vmatpush2.msra.mxu0 0.0
    %134 = vmatprep.subr.mxu0 0.0
    %135 = vmatpush2.msra.mxu0 0.0
    %136 = vmatprep.subr.mxu0 0.0
    %137 = vmatpush2.msra.mxu0 0.0
    %138 = vmatprep.subr.mxu0 0.0
    %139 = vmatpush2.msra.mxu0 0.0
    %140 = vmatprep.subr.mxu0 0.0
    %141 = vmatpush2.msra.mxu0 0.0
    %142 = vmatprep.subr.mxu0 0.0
    %143 = vmatpush2.msra.mxu0 0.0
    %144 = vmatprep.mubr.f32.mxu0 0.0
    %145 = vmatmul.mubr.f32.gmra.mxu0 %v75
    %v146 = vpop.f32.mrf.mxu0
    %v147 = vadd.f32 0.0, %v146
    %v148 = vpop.f32.mrf.mxu0
    %149 = vdwg.mxu0
    %v151 = vsel %vm73, %v66, 0
    %v153 = vsel %vm77, %v67, 0
    %155 = vmatprep.subr.mxu0 0.0
    %156 = vmatpush1.msra.mxu0 0.0
    %157 = vmatprep.subr.mxu0 0.0
    %158 = vmatpush1.msra.mxu0 0.0
    %159 = vmatprep.subr.mxu0 0.0
    %160 = vmatpush1.msra.mxu0 0.0
    %161 = vmatprep.subr.mxu0 0.0
    %162 = vmatpush1.msra.mxu0 0.0
    %163 = vmatprep.subr.mxu0 0.0
    %164 = vmatpush1.msra.mxu0 0.0
    %165 = vmatprep.subr.mxu0 0.0
    %166 = vmatpush1.msra.mxu0 0.0
    %167 = vmatprep.subr.mxu0 0.0
    %168 = vmatpush1.msra.mxu0 0.0
    %169 = vmatprep.subr.mxu0 0.0
    %170 = vmatpush1.msra.mxu0 0.0
    %171 = vmatprep.subr.mxu0 0.0
    %172 = vmatpush1.msra.mxu0 0.0
    %173 = vmatprep.subr.mxu0 0.0
    %174 = vmatpush1.msra.mxu0 0.0
    %175 = vmatprep.subr.mxu0 0.0
    %176 = vmatpush1.msra.mxu0 0.0
    %177 = vmatprep.subr.mxu0 0.0
    %178 = vmatpush1.msra.mxu0 0.0
    %179 = vmatprep.subr.mxu0 0.0
    %180 = vmatpush1.msra.mxu0 0.0
    %181 = vmatprep.subr.mxu0 0.0
    %182 = vmatpush1.msra.mxu0 0.0
    %183 = vmatprep.subr.mxu0 0.0
    %184 = vmatpush1.msra.mxu0 0.0
    %185 = vmatprep.subr.mxu0 0.0
    %186 = vmatpush1.msra.mxu0 %v153
    %187 = vmatprep.subr.mxu0 0.0
    %188 = vmatpush2.msra.mxu0 0.0
    %189 = vmatprep.subr.mxu0 0.0
    %190 = vmatpush2.msra.mxu0 0.0
    %191 = vmatprep.subr.mxu0 0.0
    %192 = vmatpush2.msra.mxu0 0.0
    %193 = vmatprep.subr.mxu0 0.0
    %194 = vmatpush2.msra.mxu0 0.0
    %195 = vmatprep.subr.mxu0 0.0
    %196 = vmatpush2.msra.mxu0 0.0
    %197 = vmatprep.subr.mxu0 0.0
    %198 = vmatpush2.msra.mxu0 0.0
    %199 = vmatprep.subr.mxu0 0.0
    %200 = vmatpush2.msra.mxu0 0.0
    %201 = vmatprep.subr.mxu0 0.0
    %202 = vmatpush2.msra.mxu0 0.0
    %203 = vmatprep.subr.mxu0 0.0
    %204 = vmatpush2.msra.mxu0 0.0
    %205 = vmatprep.subr.mxu0 0.0
    %206 = vmatpush2.msra.mxu0 0.0
    %207 = vmatprep.subr.mxu0 0.0
    %208 = vmatpush2.msra.mxu0 0.0
    %209 = vmatprep.subr.mxu0 0.0
    %210 = vmatpush2.msra.mxu0 0.0
    %211 = vmatprep.subr.mxu0 0.0
    %212 = vmatpush2.msra.mxu0 0.0
    %213 = vmatprep.subr.mxu0 0.0
    %214 = vmatpush2.msra.mxu0 0.0
    %215 = vmatprep.subr.mxu0 0.0
    %216 = vmatpush2.msra.mxu0 0.0
    %217 = vmatprep.subr.mxu0 0.0
    %218 = vmatpush2.msra.mxu0 0.0
    %219 = vmatprep.mubr.f32.mxu0 0.0
    %220 = vmatmul.mubr.f32.gmra.mxu0 %v151
    %v221 = vpop.f32.mrf.mxu0
    %v222 = vadd.f32 %v147, %v221
    %v223 = vpop.f32.mrf.mxu0
    %224 = vdwg.mxu0
    %s225 = scalar_lea.vmem %s1, 16
    %v226 = vld [vmem:[%s225] sm:$0xff]
    %227 = vrot.lane.b32.xlu0 %v67, 126
    %v228 = vpop.permute.xlu0 %227
    %v230 = vsel %vm73, %v226, 0
    %v232 = vsel %vm77, %v228, 0
    %234 = vmatprep.subr.mxu0 0.0
    %235 = vmatpush1.msra.mxu0 0.0
    %236 = vmatprep.subr.mxu0 0.0
    %237 = vmatpush1.msra.mxu0 0.0
    %238 = vmatprep.subr.mxu0 0.0
    %239 = vmatpush1.msra.mxu0 0.0
    %240 = vmatprep.subr.mxu0 0.0
    %241 = vmatpush1.msra.mxu0 0.0
    %242 = vmatprep.subr.mxu0 0.0
    %243 = vmatpush1.msra.mxu0 0.0
    %244 = vmatprep.subr.mxu0 0.0
    %245 = vmatpush1.msra.mxu0 0.0
    %246 = vmatprep.subr.mxu0 0.0
    %247 = vmatpush1.msra.mxu0 0.0
    %248 = vmatprep.subr.mxu0 0.0
    %249 = vmatpush1.msra.mxu0 0.0
    %250 = vmatprep.subr.mxu0 0.0
    %251 = vmatpush1.msra.mxu0 0.0
    %252 = vmatprep.subr.mxu0 0.0
    %253 = vmatpush1.msra.mxu0 0.0
    %254 = vmatprep.subr.mxu0 0.0
    %255 = vmatpush1.msra.mxu0 0.0
    %256 = vmatprep.subr.mxu0 0.0
    %257 = vmatpush1.msra.mxu0 0.0
    %258 = vmatprep.subr.mxu0 0.0
    %259 = vmatpush1.msra.mxu0 0.0
    %260 = vmatprep.subr.mxu0 0.0
    %261 = vmatpush1.msra.mxu0 0.0
    %262 = vmatprep.subr.mxu0 0.0
    %263 = vmatpush1.msra.mxu0 0.0
    %264 = vmatprep.subr.mxu0 0.0
    %265 = vmatpush1.msra.mxu0 %v232
    %266 = vmatprep.subr.mxu0 0.0
    %267 = vmatpush2.msra.mxu0 0.0
    %268 = vmatprep.subr.mxu0 0.0
    %269 = vmatpush2.msra.mxu0 0.0
    %270 = vmatprep.subr.mxu0 0.0
    %271 = vmatpush2.msra.mxu0 0.0
    %272 = vmatprep.subr.mxu0 0.0
    %273 = vmatpush2.msra.mxu0 0.0
    %274 = vmatprep.subr.mxu0 0.0
    %275 = vmatpush2.msra.mxu0 0.0
    %276 = vmatprep.subr.mxu0 0.0
    %277 = vmatpush2.msra.mxu0 0.0
    %278 = vmatprep.subr.mxu0 0.0
    %279 = vmatpush2.msra.mxu0 0.0
    %280 = vmatprep.subr.mxu0 0.0
    %281 = vmatpush2.msra.mxu0 0.0
    %282 = vmatprep.subr.mxu0 0.0
    %283 = vmatpush2.msra.mxu0 0.0
    %284 = vmatprep.subr.mxu0 0.0
    %285 = vmatpush2.msra.mxu0 0.0
    %286 = vmatprep.subr.mxu0 0.0
    %287 = vmatpush2.msra.mxu0 0.0
    %288 = vmatprep.subr.mxu0 0.0
    %289 = vmatpush2.msra.mxu0 0.0
    %290 = vmatprep.subr.mxu0 0.0
    %291 = vmatpush2.msra.mxu0 0.0
    %292 = vmatprep.subr.mxu0 0.0
    %293 = vmatpush2.msra.mxu0 0.0
    %294 = vmatprep.subr.mxu0 0.0
    %295 = vmatpush2.msra.mxu0 0.0
    %296 = vmatprep.subr.mxu0 0.0
    %297 = vmatpush2.msra.mxu0 0.0
    %298 = vmatprep.mubr.f32.mxu0 0.0
    %299 = vmatmul.mubr.f32.gmra.mxu0 %v230
    %v300 = vpop.f32.mrf.mxu0
    %v301 = vadd.f32 0.0, %v300
    %v302 = vpop.f32.mrf.mxu0
    %303 = vdwg.mxu0
    %v304 = vadd.f32 %v222, %v301
    %306 = vset.pattern.permute.xlu0 0
    %307 = vperm.xlu0 %306, %v65
    %v308 = vpop.permute.xlu0 %307
    %v310 = vadd.f32 %v304, %v308
    %vm311 = vcmask 130048
    %312 = vst.msk [vmem:[#allocation4] sm:$0xff] %vm311, %v310
    %v313 = vld [vmem:[%s1] sm:$0xff]
    %s314 = scalar_lea.vmem [#allocation2], 4
    %v315 = vld [vmem:[%s314] sm:$0xf]
    %v316 = vld [vmem:[%s68] sm:$0xff]
    %318 = vrot.lane.b32.xlu0 %v315, 127
    %v319 = vpop.permute.xlu0 %318
    %v321 = vsel %vm73, %v316, 0
    %v323 = vsel %vm77, %v319, 0
    %325 = vmatprep.subr.mxu0 0.0
    %326 = vmatpush1.msra.mxu0 0.0
    %327 = vmatprep.subr.mxu0 0.0
    %328 = vmatpush1.msra.mxu0 0.0
    %329 = vmatprep.subr.mxu0 0.0
    %330 = vmatpush1.msra.mxu0 0.0
    %331 = vmatprep.subr.mxu0 0.0
    %332 = vmatpush1.msra.mxu0 0.0
    %333 = vmatprep.subr.mxu0 0.0
    %334 = vmatpush1.msra.mxu0 0.0
    %335 = vmatprep.subr.mxu0 0.0
    %336 = vmatpush1.msra.mxu0 0.0
    %337 = vmatprep.subr.mxu0 0.0
    %338 = vmatpush1.msra.mxu0 0.0
    %339 = vmatprep.subr.mxu0 0.0
    %340 = vmatpush1.msra.mxu0 0.0
    %341 = vmatprep.subr.mxu0 0.0
    %342 = vmatpush1.msra.mxu0 0.0
    %343 = vmatprep.subr.mxu0 0.0
    %344 = vmatpush1.msra.mxu0 0.0
    %345 = vmatprep.subr.mxu0 0.0
    %346 = vmatpush1.msra.mxu0 0.0
    %347 = vmatprep.subr.mxu0 0.0
    %348 = vmatpush1.msra.mxu0 0.0
    %349 = vmatprep.subr.mxu0 0.0
    %350 = vmatpush1.msra.mxu0 0.0
    %351 = vmatprep.subr.mxu0 0.0
    %352 = vmatpush1.msra.mxu0 0.0
    %353 = vmatprep.subr.mxu0 0.0
    %354 = vmatpush1.msra.mxu0 0.0
    %355 = vmatprep.subr.mxu0 0.0
    %356 = vmatpush1.msra.mxu0 %v323
    %357 = vmatprep.subr.mxu0 0.0
    %358 = vmatpush2.msra.mxu0 0.0
    %359 = vmatprep.subr.mxu0 0.0
    %360 = vmatpush2.msra.mxu0 0.0
    %361 = vmatprep.subr.mxu0 0.0
    %362 = vmatpush2.msra.mxu0 0.0
    %363 = vmatprep.subr.mxu0 0.0
    %364 = vmatpush2.msra.mxu0 0.0
    %365 = vmatprep.subr.mxu0 0.0
    %366 = vmatpush2.msra.mxu0 0.0
    %367 = vmatprep.subr.mxu0 0.0
    %368 = vmatpush2.msra.mxu0 0.0
    %369 = vmatprep.subr.mxu0 0.0
    %370 = vmatpush2.msra.mxu0 0.0
    %371 = vmatprep.subr.mxu0 0.0
    %372 = vmatpush2.msra.mxu0 0.0
    %373 = vmatprep.subr.mxu0 0.0
    %374 = vmatpush2.msra.mxu0 0.0
    %375 = vmatprep.subr.mxu0 0.0
    %376 = vmatpush2.msra.mxu0 0.0
    %377 = vmatprep.subr.mxu0 0.0
    %378 = vmatpush2.msra.mxu0 0.0
    %379 = vmatprep.subr.mxu0 0.0
    %380 = vmatpush2.msra.mxu0 0.0
    %381 = vmatprep.subr.mxu0 0.0
    %382 = vmatpush2.msra.mxu0 0.0
    %383 = vmatprep.subr.mxu0 0.0
    %384 = vmatpush2.msra.mxu0 0.0
    %385 = vmatprep.subr.mxu0 0.0
    %386 = vmatpush2.msra.mxu0 0.0
    %387 = vmatprep.subr.mxu0 0.0
    %388 = vmatpush2.msra.mxu0 0.0
    %389 = vmatprep.mubr.f32.mxu0 0.0
    %390 = vmatmul.mubr.f32.gmra.mxu0 %v321
    %v391 = vpop.f32.mrf.mxu0
    %v392 = vadd.f32 0.0, %v391
    %v393 = vpop.f32.mrf.mxu0
    %394 = vdwg.mxu0
    %v396 = vsel %vm73, %v313, 0
    %v398 = vsel %vm77, %v315, 0
    %400 = vmatprep.subr.mxu0 0.0
    %401 = vmatpush1.msra.mxu0 0.0
    %402 = vmatprep.subr.mxu0 0.0
    %403 = vmatpush1.msra.mxu0 0.0
    %404 = vmatprep.subr.mxu0 0.0
    %405 = vmatpush1.msra.mxu0 0.0
    %406 = vmatprep.subr.mxu0 0.0
    %407 = vmatpush1.msra.mxu0 0.0
    %408 = vmatprep.subr.mxu0 0.0
    %409 = vmatpush1.msra.mxu0 0.0
    %410 = vmatprep.subr.mxu0 0.0
    %411 = vmatpush1.msra.mxu0 0.0
    %412 = vmatprep.subr.mxu0 0.0
    %413 = vmatpush1.msra.mxu0 0.0
    %414 = vmatprep.subr.mxu0 0.0
    %415 = vmatpush1.msra.mxu0 0.0
    %416 = vmatprep.subr.mxu0 0.0
    %417 = vmatpush1.msra.mxu0 0.0
    %418 = vmatprep.subr.mxu0 0.0
    %419 = vmatpush1.msra.mxu0 0.0
    %420 = vmatprep.subr.mxu0 0.0
    %421 = vmatpush1.msra.mxu0 0.0
    %422 = vmatprep.subr.mxu0 0.0
    %423 = vmatpush1.msra.mxu0 0.0
    %424 = vmatprep.subr.mxu0 0.0
    %425 = vmatpush1.msra.mxu0 0.0
    %426 = vmatprep.subr.mxu0 0.0
    %427 = vmatpush1.msra.mxu0 0.0
    %428 = vmatprep.subr.mxu0 0.0
    %429 = vmatpush1.msra.mxu0 0.0
    %430 = vmatprep.subr.mxu0 0.0
    %431 = vmatpush1.msra.mxu0 %v398
    %432 = vmatprep.subr.mxu0 0.0
    %433 = vmatpush2.msra.mxu0 0.0
    %434 = vmatprep.subr.mxu0 0.0
    %435 = vmatpush2.msra.mxu0 0.0
    %436 = vmatprep.subr.mxu0 0.0
    %437 = vmatpush2.msra.mxu0 0.0
    %438 = vmatprep.subr.mxu0 0.0
    %439 = vmatpush2.msra.mxu0 0.0
    %440 = vmatprep.subr.mxu0 0.0
    %441 = vmatpush2.msra.mxu0 0.0
    %442 = vmatprep.subr.mxu0 0.0
    %443 = vmatpush2.msra.mxu0 0.0
    %444 = vmatprep.subr.mxu0 0.0
    %445 = vmatpush2.msra.mxu0 0.0
    %446 = vmatprep.subr.mxu0 0.0
    %447 = vmatpush2.msra.mxu0 0.0
    %448 = vmatprep.subr.mxu0 0.0
    %449 = vmatpush2.msra.mxu0 0.0
    %450 = vmatprep.subr.mxu0 0.0
    %451 = vmatpush2.msra.mxu0 0.0
    %452 = vmatprep.subr.mxu0 0.0
    %453 = vmatpush2.msra.mxu0 0.0
    %454 = vmatprep.subr.mxu0 0.0
    %455 = vmatpush2.msra.mxu0 0.0
    %456 = vmatprep.subr.mxu0 0.0
    %457 = vmatpush2.msra.mxu0 0.0
    %458 = vmatprep.subr.mxu0 0.0
    %459 = vmatpush2.msra.mxu0 0.0
    %460 = vmatprep.subr.mxu0 0.0
    %461 = vmatpush2.msra.mxu0 0.0
    %462 = vmatprep.subr.mxu0 0.0
    %463 = vmatpush2.msra.mxu0 0.0
    %464 = vmatprep.mubr.f32.mxu0 0.0
    %465 = vmatmul.mubr.f32.gmra.mxu0 %v396
    %v466 = vpop.f32.mrf.mxu0
    %v467 = vadd.f32 %v392, %v466
    %v468 = vpop.f32.mrf.mxu0
    %469 = vdwg.mxu0
    %v470 = vld [vmem:[%s225] sm:$0xff]
    %471 = vrot.lane.b32.xlu0 %v315, 126
    %v472 = vpop.permute.xlu0 %471
    %v474 = vsel %vm73, %v470, 0
    %v476 = vsel %vm77, %v472, 0
    %478 = vmatprep.subr.mxu0 0.0
    %479 = vmatpush1.msra.mxu0 0.0
    %480 = vmatprep.subr.mxu0 0.0
    %481 = vmatpush1.msra.mxu0 0.0
    %482 = vmatprep.subr.mxu0 0.0
    %483 = vmatpush1.msra.mxu0 0.0
    %484 = vmatprep.subr.mxu0 0.0
    %485 = vmatpush1.msra.mxu0 0.0
    %486 = vmatprep.subr.mxu0 0.0
    %487 = vmatpush1.msra.mxu0 0.0
    %488 = vmatprep.subr.mxu0 0.0
    %489 = vmatpush1.msra.mxu0 0.0
    %490 = vmatprep.subr.mxu0 0.0
    %491 = vmatpush1.msra.mxu0 0.0
    %492 = vmatprep.subr.mxu0 0.0
    %493 = vmatpush1.msra.mxu0 0.0
    %494 = vmatprep.subr.mxu0 0.0
    %495 = vmatpush1.msra.mxu0 0.0
    %496 = vmatprep.subr.mxu0 0.0
    %497 = vmatpush1.msra.mxu0 0.0
    %498 = vmatprep.subr.mxu0 0.0
    %499 = vmatpush1.msra.mxu0 0.0
    %500 = vmatprep.subr.mxu0 0.0
    %501 = vmatpush1.msra.mxu0 0.0
    %502 = vmatprep.subr.mxu0 0.0
    %503 = vmatpush1.msra.mxu0 0.0
    %504 = vmatprep.subr.mxu0 0.0
    %505 = vmatpush1.msra.mxu0 0.0
    %506 = vmatprep.subr.mxu0 0.0
    %507 = vmatpush1.msra.mxu0 0.0
    %508 = vmatprep.subr.mxu0 0.0
    %509 = vmatpush1.msra.mxu0 %v476
    %510 = vmatprep.subr.mxu0 0.0
    %511 = vmatpush2.msra.mxu0 0.0
    %512 = vmatprep.subr.mxu0 0.0
    %513 = vmatpush2.msra.mxu0 0.0
    %514 = vmatprep.subr.mxu0 0.0
    %515 = vmatpush2.msra.mxu0 0.0
    %516 = vmatprep.subr.mxu0 0.0
    %517 = vmatpush2.msra.mxu0 0.0
    %518 = vmatprep.subr.mxu0 0.0
    %519 = vmatpush2.msra.mxu0 0.0
    %520 = vmatprep.subr.mxu0 0.0
    %521 = vmatpush2.msra.mxu0 0.0
    %522 = vmatprep.subr.mxu0 0.0
    %523 = vmatpush2.msra.mxu0 0.0
    %524 = vmatprep.subr.mxu0 0.0
    %525 = vmatpush2.msra.mxu0 0.0
    %526 = vmatprep.subr.mxu0 0.0
    %527 = vmatpush2.msra.mxu0 0.0
    %528 = vmatprep.subr.mxu0 0.0
    %529 = vmatpush2.msra.mxu0 0.0
    %530 = vmatprep.subr.mxu0 0.0
    %531 = vmatpush2.msra.mxu0 0.0
    %532 = vmatprep.subr.mxu0 0.0
    %533 = vmatpush2.msra.mxu0 0.0
    %534 = vmatprep.subr.mxu0 0.0
    %535 = vmatpush2.msra.mxu0 0.0
    %536 = vmatprep.subr.mxu0 0.0
    %537 = vmatpush2.msra.mxu0 0.0
    %538 = vmatprep.subr.mxu0 0.0
    %539 = vmatpush2.msra.mxu0 0.0
    %540 = vmatprep.subr.mxu0 0.0
    %541 = vmatpush2.msra.mxu0 0.0
    %542 = vmatprep.mubr.f32.mxu0 0.0
    %543 = vmatmul.mubr.f32.gmra.mxu0 %v474
    %v544 = vpop.f32.mrf.mxu0
    %v545 = vadd.f32 0.0, %v544
    %v546 = vpop.f32.mrf.mxu0
    %547 = vdwg.mxu0
    %v548 = vadd.f32 %v467, %v545
    %v549 = vadd.f32 %v548, %v308
    %s550 = scalar_lea.vmem [#allocation4], 8
    %551 = vst.msk [vmem:[%s550] sm:$0xff] %vm311, %v549
    // Predicated region
    $region26: #{basic_conv_forward.1} parent=1 // pred_check
      _
    $region27: #{basic_conv_forward.1} parent=1 // pred_check_branch
      %553 = sbr.rel (0) target = $region29
    $region28: #{basic_conv_forward.1} parent=1 // pred_region
      %s555 = ssub.s32 256, 256
      %556 = vsyncadd [#allocation5], %s555
      %s557 = sshll.u32 [#allocation4], 4
      %s558 = int_to_ptr.vmem [resolvable:$true] %s557
      %563 = dma.vmem_to_hbm [thread:$0]  %s558, 256, %s6, [#allocation5], 128, 128, 8
    $region29: #{basic_conv_forward.1} parent=1 // pred_fallthru
      _
    // Predicated region
    $region30: #{basic_conv_forward.1} parent=1 // pred_check
      _
    $region31: #{basic_conv_forward.1} parent=1 // pred_check_branch
      %565 = sbr.rel (0) target = $region33
    $region32: #{basic_conv_forward.1} parent=1 // pred_region
      %566 = dma.done [#allocation5], 256
    $region33: #{basic_conv_forward.1} parent=1 // pred_fallthru
      _
    %567 = vsyncpa [#allocation5], 1

</llo_original>
